<compile_context>
chip_gen: v6e
topology: v6e:2x2x1
jax: 0.10.0
libtpu: 0.0.40
codegen_flags: <defaults>
</compile_context>

<pallas_src>
import functools
import math

import jax
import jax.numpy as jnp
from jax.experimental import pallas as pl
from jax.experimental.pallas import tpu as pltpu


_TARGET_BLOCK_BYTES = 2 * 1024 * 1024   # per-step input block target (~1-4 MiB sweet spot)
_MAX_BLOCK_BYTES = 4 * 1024 * 1024


def _simple_attn_kernel(x_ref, w_ref, b_ref, o_ref, acc_ref, *, inv_scale):
    """x_ref: (TB, L, TD) VMEM; w_ref: (1, TD) VMEM; b_ref: (1, 1) SMEM;
    o_ref: (TB, L) VMEM; acc_ref: (TB, L) f32 VMEM scratch."""
    k = pl.program_id(1)

    @pl.when(k == 0)
    def _init():
        acc_ref[...] = jnp.zeros_like(acc_ref)

    # Rank-1 contraction on the VPU: multiply in the input dtype, accumulate the
    # D reduction in f32 (avoids a full-tile f32 upcast of the (TB, L, TD) block).
    prod = x_ref[...] * w_ref[...][None, :, :]                  # (TB, L, TD)
    acc_ref[...] += jnp.sum(prod, axis=-1, dtype=jnp.float32)   # (TB, L)

    @pl.when(k == pl.num_programs(1) - 1)
    def _finalize():
        bias = b_ref[0, 0]                                      # scalar from SMEM
        # (scores + b) / sqrt(dim).  The bias is constant along the softmax axis
        # (softmax-invariant) but is kept for fidelity with the PyTorch module.
        logits = (acc_ref[...] + bias) * inv_scale
        # Numerically-stable softmax over L (axis -2 of the original [..., L, 1]).
        m = jnp.max(logits, axis=-1, keepdims=True)
        p = jnp.exp(logits - m)
        denom = jnp.sum(p, axis=-1, keepdims=True)
        o_ref[...] = (p * pl.reciprocal(denom, approx=False)).astype(o_ref.dtype)


def _sublane_multiple(dtype):
    itemsize = jnp.dtype(dtype).itemsize
    return max(8, 32 // itemsize)        # 8 for f32, 16 for bf16, 32 for 8-bit


def _choose_td(L, D, itemsize, sub):
    """Pick a D chunk.  Only chunk with lane-aligned divisors of D so a partial
    last D block can never feed garbage into the accumulator."""
    if sub * L * D * itemsize <= _MAX_BLOCK_BYTES:
        return D
    for cand in (4096, 2048, 1024, 512, 256, 128):
        if D % cand == 0 and sub * L * cand * itemsize <= _MAX_BLOCK_BYTES:
            return cand
    return D  # no legal chunking; fall back to full D


def _choose_tb(B, L, TD, itemsize, sub):
    """Adaptive batch tile: ~_TARGET_BLOCK_BYTES per input block, a multiple of the
    sublane packing (or exactly B), capped at ceil(B/2) when legal so the parallel
    grid axis has >= 2 steps (keeps both v7x TensorCores busy)."""
    if B <= sub:
        return B                                    # full batch dim is always legal
    row_bytes = max(1, L * TD * itemsize)
    tb = max(sub, (_TARGET_BLOCK_BYTES // row_bytes) // sub * sub)
    tb = min(tb, (B // sub) * sub)
    half = -(-B // 2)                                # ceil(B/2)
    half_aligned = ((half + sub - 1) // sub) * sub
    if sub <= half_aligned < B:
        tb = min(tb, half_aligned)
    return max(tb, sub)


def simple_dot_product_attention(x, weight, bias, *, block_b=None, block_d=None):
    """softmax((x @ weight.T + bias) / sqrt(dim), axis=-2).

    x: [..., L, dim]; weight: [1, dim]; bias: [1].  Returns [..., L, 1].
    """
    *lead, L, D = x.shape
    B = math.prod(lead) if lead else 1
    xf = x.reshape(B, L, D)
    w2 = weight.reshape(1, D).astype(x.dtype)
    b2 = bias.reshape(1, 1).astype(jnp.float32)

    itemsize = jnp.dtype(x.dtype).itemsize
    sub = _sublane_multiple(x.dtype)
    TD = block_d if block_d is not None else _choose_td(L, D, itemsize, sub)
    TB = block_b if block_b is not None else _choose_tb(B, L, TD, itemsize, sub)
    TB = min(TB, B)

    grid = (pl.cdiv(B, TB), pl.cdiv(D, TD))

    # Explicit VMEM budget: double-buffered input blocks + output + scratch + weight.
    # The adaptive tiles above keep this well under v5e's 16 MiB scoped default and
    # v7x's 64 MiB physical VMEM; the limit is set explicitly with headroom.
    vmem_need = (2 * TB * L * TD * itemsize      # double-buffered x blocks
                 + 2 * TB * L * itemsize         # double-buffered output block
                 + TB * L * 4                    # f32 accumulator scratch
                 + 2 * TD * itemsize             # weight chunk
                 + (1 << 20))                    # slack
    vmem_limit = int(min(max(32 << 20, vmem_need), 56 << 20))

    kernel = functools.partial(_simple_attn_kernel, inv_scale=1.0 / math.sqrt(D))

    bytes_accessed = (xf.size * xf.dtype.itemsize
                      + w2.size * w2.dtype.itemsize
                      + b2.size * b2.dtype.itemsize
                      + B * L * xf.dtype.itemsize)
    cost = pl.CostEstimate(flops=2 * B * L * D + 5 * B * L,
                           transcendentals=B * L,
                           bytes_accessed=bytes_accessed)

    out = pl.pallas_call(
        kernel,
        out_shape=jax.ShapeDtypeStruct((B, L), x.dtype),
        grid_spec=pltpu.PrefetchScalarGridSpec(
            num_scalar_prefetch=0,
            grid=grid,
            in_specs=[
                pl.BlockSpec((TB, L, TD), lambda i, k: (i, 0, k)),
                pl.BlockSpec((1, TD), lambda i, k: (0, k)),          # tiny weight chunk
                pl.BlockSpec(memory_space=pltpu.MemorySpace.SMEM),   # bias scalar
            ],
            out_specs=pl.BlockSpec((TB, L), lambda i, k: (i, 0)),    # resident across k
            scratch_shapes=[pltpu.VMEM((TB, L), jnp.float32)],
        ),
        compiler_params=pltpu.CompilerParams(
            dimension_semantics=("parallel", "arbitrary"),
            vmem_limit_bytes=vmem_limit),
        cost_estimate=cost,
    )(xf, w2, b2)

    # Reattach the trailing singleton that the module's Linear(dim, 1) produces.
    return out.reshape(*lead, L, 1)


def _reference(x, weight, bias, dim):
    logits = (jnp.einsum("...ld,od->...lo", x, weight) + bias) / math.sqrt(dim)
    return jax.nn.softmax(logits, axis=-2)


if __name__ == "__main__":
    key = jax.random.PRNGKey(0)
    kx, kw, kb, kx2 = jax.random.split(key, 4)

    # Small shapes consistent with the module: batch=2, seq=8, hidden (dim)=32.
    B, L, D = 2, 8, 32
    x = jax.random.normal(kx, (B, L, D), dtype=jnp.float32)

    # torch.nn.Linear(dim, 1) parameters: weight [1, dim], bias [1]
    bound = 1.0 / math.sqrt(D)
    weight = jax.random.uniform(kw, (1, D), minval=-bound, maxval=bound, dtype=jnp.float32)
    bias = jax.random.uniform(kb, (1,), minval=-bound, maxval=bound, dtype=jnp.float32)

    out = simple_dot_product_attention(x, weight, bias)
    jax.block_until_ready(out)

    ref = _reference(x, weight, bias, D)
    assert out.shape == (B, L, 1), f"bad output shape {out.shape}"
    assert jnp.allclose(out, ref, atol=1e-5, rtol=1e-5), "output mismatch vs reference"
    assert jnp.allclose(jnp.sum(out, axis=-2), 1.0, atol=1e-5), "softmax axis mismatch"

    # Second check: multiple leading dims + a multi-step parallel batch grid.
    B1, B2, L2, D2 = 6, 8, 128, 256
    x2 = jax.random.normal(kx2, (B1, B2, L2, D2), dtype=jnp.float32)
    bound2 = 1.0 / math.sqrt(D2)
    kw2, kb2 = jax.random.split(kw)
    weight2 = jax.random.uniform(kw2, (1, D2), minval=-bound2, maxval=bound2, dtype=jnp.float32)
    bias2 = jax.random.uniform(kb2, (1,), minval=-bound2, maxval=bound2, dtype=jnp.float32)

    out2 = simple_dot_product_attention(x2, weight2, bias2)
    jax.block_until_ready(out2)
    ref2 = _reference(x2, weight2, bias2, D2)
    assert out2.shape == (B1, B2, L2, 1), f"bad output shape {out2.shape}"
    assert jnp.allclose(out2, ref2, atol=1e-5, rtol=1e-5), "output mismatch vs reference (large)"
    assert jnp.allclose(jnp.sum(out2, axis=-2), 1.0, atol=1e-5), "softmax axis mismatch (large)"

    print("KERNEL_OK")
</pallas_src>

<mosaic_0001>
module attributes {stable_mosaic.version = 11 : i64} {
  func.func @_simple_attn_kernel(%arg0: i32, %arg1: i32, %arg2: memref<2x8x32xf32, #tpu.memory_space<vmem>>, %arg3: memref<1x32xf32, #tpu.memory_space<vmem>>, %arg4: memref<1x1xf32, #tpu.memory_space<smem>>, %arg5: memref<2x8xf32, #tpu.memory_space<vmem>>, %arg6: memref<2x8xf32, #tpu.memory_space<vmem>>) attributes {dimension_semantics = [#tpu.dimension_semantics<parallel>, #tpu.dimension_semantics<arbitrary>], iteration_bounds = array<i64: 1, 1>, scalar_prefetch = 0 : i64, scratch_operands = 1 : i64, tpu.core_type = #tpu.core_type<tc>, window_params = [{transform_indices = @transform_0, window_bounds = array<i64: 2, 8, 32>}, {transform_indices = @transform_1, window_bounds = array<i64: 1, 32>}, {transform_indices = @transform_2, window_bounds = array<i64: 1, 1>}, {transform_indices = @transform_3, window_bounds = array<i64: 2, 8>}]} {
    %c0_i32 = arith.constant 0 : i32
    %0 = arith.cmpi eq, %arg1, %c0_i32 : i32
    %1 = arith.extui %0 : i1 to i32
    %c0_i32_0 = arith.constant 0 : i32
    %2 = arith.cmpi ne, %1, %c0_i32_0 : i32
    scf.if %2 {
      %cst_11 = arith.constant 0.000000e+00 : f32
      %15 = vector.broadcast %cst_11 : f32 to vector<2x8xf32>
      %c0_12 = arith.constant 0 : index
      %c0_13 = arith.constant 0 : index
      %16 = vector.load %arg6[%c0_12, %c0_13] : memref<2x8xf32, #tpu.memory_space<vmem>>, vector<2x8xf32>
      tpu.vector_store %arg6[%c0_12, %c0_13], %15 {strides = array<i32>} : memref<2x8xf32, #tpu.memory_space<vmem>>, vector<2x8xf32>,
    } else {
    }
    %c0 = arith.constant 0 : index
    %c0_1 = arith.constant 0 : index
    %c0_2 = arith.constant 0 : index
    %3 = vector.load %arg2[%c0, %c0_1, %c0_2] : memref<2x8x32xf32, #tpu.memory_space<vmem>>, vector<2x8x32xf32>
    %c0_3 = arith.constant 0 : index
    %c0_4 = arith.constant 0 : index
    %4 = vector.load %arg3[%c0_3, %c0_4] : memref<1x32xf32, #tpu.memory_space<vmem>>, vector<1x32xf32>
    %5 = vector.shape_cast %4 : vector<1x32xf32> to vector<1x1x32xf32>
    %6 = vector.broadcast %5 : vector<1x1x32xf32> to vector<2x8x32xf32>
    %7 = arith.mulf %3, %6 : vector<2x8x32xf32>
    %c0_5 = arith.constant 0 : index
    %c0_6 = arith.constant 0 : index
    %8 = vector.load %arg6[%c0_5, %c0_6] : memref<2x8xf32, #tpu.memory_space<vmem>>, vector<2x8xf32>
    %cst = arith.constant dense<0.000000e+00> : vector<2x8xf32>
    %9 = vector.multi_reduction <add>, %7, %cst [2] : vector<2x8x32xf32> to vector<2x8xf32>
    %10 = arith.addf %8, %9 : vector<2x8xf32>
    %c0_7 = arith.constant 0 : index
    %c0_8 = arith.constant 0 : index
    %11 = vector.load %arg6[%c0_7, %c0_8] : memref<2x8xf32, #tpu.memory_space<vmem>>, vector<2x8xf32>
    tpu.vector_store %arg6[%c0_7, %c0_8], %10 {strides = array<i32>} : memref<2x8xf32, #tpu.memory_space<vmem>>, vector<2x8xf32>,
    %c0_i32_9 = arith.constant 0 : i32
    %12 = arith.cmpi eq, %arg1, %c0_i32_9 : i32
    %13 = arith.extui %12 : i1 to i32
    %c0_i32_10 = arith.constant 0 : i32
    %14 = arith.cmpi ne, %13, %c0_i32_10 : i32
    scf.if %14 {
      %c0_11 = arith.constant 0 : index
      %c0_12 = arith.constant 0 : index
      %15 = memref.load %arg4[%c0_11, %c0_12] : memref<1x1xf32, #tpu.memory_space<smem>>
      %c0_13 = arith.constant 0 : index
      %c0_14 = arith.constant 0 : index
      %16 = vector.load %arg6[%c0_13, %c0_14] : memref<2x8xf32, #tpu.memory_space<vmem>>, vector<2x8xf32>
      %17 = vector.broadcast %15 : f32 to vector<2x8xf32>
      %18 = arith.addf %16, %17 : vector<2x8xf32>
      %cst_15 = arith.constant 0.176776692 : f32
      %19 = vector.broadcast %cst_15 : f32 to vector<2x8xf32>
      %20 = arith.mulf %18, %19 : vector<2x8xf32>
      %cst_16 = arith.constant dense<0xFF800000> : vector<2xf32>
      %21 = vector.multi_reduction <maximumf>, %20, %cst_16 [1] : vector<2x8xf32> to vector<2xf32>
      %22 = vector.shape_cast %21 : vector<2xf32> to vector<2x1xf32>
      %23 = vector.broadcast %22 : vector<2x1xf32> to vector<2x8xf32>
      %24 = arith.subf %20, %23 : vector<2x8xf32>
      %25 = math.exp %24 : vector<2x8xf32>
      %cst_17 = arith.constant dense<0.000000e+00> : vector<2xf32>
      %26 = vector.multi_reduction <add>, %25, %cst_17 [1] : vector<2x8xf32> to vector<2xf32>
      %27 = vector.shape_cast %26 : vector<2xf32> to vector<2x1xf32>
      %28 = tpu.reciprocal %27 : vector<2x1xf32> -> vector<2x1xf32>
      %29 = vector.broadcast %28 : vector<2x1xf32> to vector<2x8xf32>
      %30 = arith.mulf %25, %29 : vector<2x8xf32>
      %c0_18 = arith.constant 0 : index
      %c0_19 = arith.constant 0 : index
      %31 = vector.load %arg5[%c0_18, %c0_19] : memref<2x8xf32, #tpu.memory_space<vmem>>, vector<2x8xf32>
      tpu.vector_store %arg5[%c0_18, %c0_19], %30 {strides = array<i32>} : memref<2x8xf32, #tpu.memory_space<vmem>>, vector<2x8xf32>,
    } else {
    }
    return
  }
  func.func @transform_0(%arg0: i32, %arg1: i32) -> (i32, i32, i32) {
    %c0_i32 = arith.constant 0 : i32
    %c0_i32_0 = arith.constant 0 : i32
    return %arg0, %c0_i32, %arg1 : i32, i32, i32
  }
  func.func @transform_1(%arg0: i32, %arg1: i32) -> (i32, i32) {
    %c0_i32 = arith.constant 0 : i32
    %c0_i32_0 = arith.constant 0 : i32
    return %c0_i32, %arg1 : i32, i32
  }
  func.func @transform_2(%arg0: i32, %arg1: i32) -> (i32, i32) {
    %c0_i32 = arith.constant 0 : i32
    %c0_i32_0 = arith.constant 0 : i32
    %c0_i32_1 = arith.constant 0 : i32
    return %c0_i32, %c0_i32_0 : i32, i32
  }
  func.func @transform_3(%arg0: i32, %arg1: i32) -> (i32, i32) {
    %c0_i32 = arith.constant 0 : i32
    %c0_i32_0 = arith.constant 0 : i32
    return %arg0, %c0_i32 : i32, i32
  }
}

</mosaic_0001>

<llo_original>
// kernel: tpu_custom_call.1
$region0: #{tpu_custom_call.1}
  #allocation0 [shape = 'u32[]', space=smem, size = 0x4, offset = 0x4, fixed_abs, tag = 'smem constant byte address 0x4 - core index']
  #allocation1 [shape = 'u32[144,128]{1,0:T(1,128)}', space=vmem, size = 0x12000, scoped, tag = 'internal scratch']
  #allocation2 [shape = 'f32[2,8]{1,0:T(2,128)}', space=vmem, size = 0x400, scoped, tag = 'scratch operand']
  #allocation3 [shape = 'f32[1,1]{1,0:T(1,128)S(6)}', space=smem, size = 0x200, scoped, tag = 'scoped memory for tpu_custom_call.1']
  %s0 = inlined_call_operand.hbm [shape: f32[2,8,32], index: 0, kind: input, shape index: {}]
  %s1 = inlined_call_operand.vmem [shape: f32[1,32], index: 1, kind: input, shape index: {}]
  %s2 = inlined_call_operand.<no memory space> [shape: f32[1,1], index: 2, kind: input, shape index: {}]
  %s3 = inlined_call_operand.hbm [shape: f32[2,8], index: 3, kind: output, shape index: {}]
  %s4 = sld [smem:[#allocation0]]
  $region34: #{tpu_custom_call.1} parent=0
    _
  %s6 = ssub.s32 1, %s4
  %s7 = scalar_select 0, %s6, %s4
  %8 = sst [smem:[#allocation3]] %s2
  $region1: #{tpu_custom_call.1} parent=0
    #allocation4 [shape = 'u8[8192]{0}', space=vmem, size = 0x2000, scoped, tag = 'input window, operand 0, single buffered']
    #allocation5 [shape = 's32[1]{0}', space=sflag, size = 0x4, scoped, tag = 'scoped memory for tpu_custom_call.1']
    #allocation6 [shape = 's32[1]{0}', space=sflag, size = 0x4, scoped, tag = 'scoped memory for tpu_custom_call.1']
    #allocation7 [shape = 'u8[1024]{0}', space=vmem, size = 0x400, scoped, tag = 'output window, operand 0, single buffered']
    %9 = vsyncpa [#allocation5], 0
    %10 = vsyncpa [#allocation6], 0
    // Predicated region
    $region2: #{tpu_custom_call.1} parent=1 // pred_check
      _
    $region3: #{tpu_custom_call.1} parent=1 // pred_check_branch
      %12 = sbr.rel (0) target = $region5
    $region4: #{tpu_custom_call.1} parent=1 // pred_region
      %s14 = ssub.s32 256, 256
      %15 = vsyncadd [#allocation5], %s14
      %s16 = sshll.u32 [#allocation4], 4
      %s17 = int_to_ptr.vmem [resolvable:$true] %s16
      %22 = dma.hbm_to_vmem [thread:$0]  %s0, 256, %s17, [#allocation5], 128, 128, 8
    $region5: #{tpu_custom_call.1} parent=1 // pred_fallthru
      _
    // Predicated region
    $region6: #{tpu_custom_call.1} parent=1 // pred_check
      _
    $region7: #{tpu_custom_call.1} parent=1 // pred_check_branch
      %24 = sbr.rel (0) target = $region9
    $region8: #{tpu_custom_call.1} parent=1 // pred_region
      _
    $region9: #{tpu_custom_call.1} parent=1 // pred_fallthru
      _
    // Predicated region
    $region10: #{tpu_custom_call.1} parent=1 // pred_check
      _
    $region11: #{tpu_custom_call.1} parent=1 // pred_check_branch
      %26 = sbr.rel (0) target = $region13
    $region12: #{tpu_custom_call.1} parent=1 // pred_region
      _
    $region13: #{tpu_custom_call.1} parent=1 // pred_fallthru
      _
    // Predicated region
    $region14: #{tpu_custom_call.1} parent=1 // pred_check
      _
    $region15: #{tpu_custom_call.1} parent=1 // pred_check_branch
      %28 = sbr.rel (0) target = $region17
    $region16: #{tpu_custom_call.1} parent=1 // pred_region
      %29 = dma.done [#allocation5], 256
    $region17: #{tpu_custom_call.1} parent=1 // pred_fallthru
      _
    %p30 = scmp.eq.s32.totalorder 0, 0
    // Predicated region
    $region18: #{tpu_custom_call.1} parent=1 // pred_check
      %p31 = pneg %p30
    $region19: #{tpu_custom_call.1} parent=1 // pred_check_branch
      %33 = sbr.rel (%p31) target = $region21
    $region20: #{tpu_custom_call.1} parent=1 // pred_region
      %vm34 = vcmask 58368
      %35 = vst.msk [vmem:[#allocation2] sm:$0x3] %vm34, 0.0
    $region21: #{tpu_custom_call.1} parent=1 // pred_fallthru
      _
    %v36 = vld [vmem:[#allocation4] sm:$0xff]
    %v37 = vld [vmem:[#allocation4 + $0x8] sm:$0xff]
    %v38 = vld [vmem:[%s1] sm:$0x1]
    %v40 = vlaneseq
    %v41 = vshrl.u32 %v40, 7
    %v42 = vsub.s32 0, %v41
    %v43 = vrot.slane %v38, %v42
    %v45 = vmul.f32 %v36, %v43
    %v46 = vmul.f32 %v37, %v43
    %v47 = vld [vmem:[#allocation2] sm:$0x3]
    %vm48 = vcmask 261120
    %v49 = vsel %vm48, %v45, 0.0
    %50 = vadd.xlane.f32.xlu0 %v49
    %v51 = vpop.xlane.xlu0 %50
    %v52 = vsel %vm48, %v46, 0.0
    %53 = vadd.xlane.f32.xlu0 %v52
    %v54 = vpop.xlane.xlu0 %53
    %v57 = vlaneseq
    %v58 = vand.u32 %v57, 127
    %v59 = vlaneseq
    %v60 = vshrl.u32 %v59, 7
    %v61 = vsub.s32 %v58, %v60
    %v62 = vrot.slane %v51, %v61
    %v63 = vlaneseq
    %v64 = vshrl.u32 %v63, 7
    %v65 = vsub.s32 %v58, %v64
    %v66 = vrot.slane %v54, %v65
    %vm67 = vcmask 1041409
    %v68 = vsel %vm67, %v66, %v62
    %v70 = vadd.f32 %v47, %v68
    %vm71 = vcmask 58368
    %72 = vst.msk [vmem:[#allocation2] sm:$0x3] %vm71, %v70
    // Predicated region
    $region22: #{tpu_custom_call.1} parent=1 // pred_check
      %p73 = pneg %p30
    $region23: #{tpu_custom_call.1} parent=1 // pred_check_branch
      %75 = sbr.rel (%p73) target = $region25
    $region24: #{tpu_custom_call.1} parent=1 // pred_region
      %s76 = sld [smem:[#allocation3]]
      %v77 = vld [vmem:[#allocation2] sm:$0x3]
      %v78 = vstv %s76
      %v79 = vadd.f32 %v77, %v78
      %v80 = vmul.f32 %v79, 0.17677669
      %v81 = vsel %vm71, %v80, -inf
      %82 = vmax.xlane.f32.xlu0 %v81
      %v83 = vpop.xlane.xlu0 %82
      %v84 = vsub.f32 %v80, %v83
      %v85 = vmul.f32 %v84, 1.442695
      %v86 = vpow.pop %v85
      %v87 = vsel %vm71, %v86, 0.0
      %88 = vadd.xlane.f32.xlu0 %v87
      %v89 = vpop.xlane.xlu0 %88
      %v90 = vrcp.pop %v89
      %v91 = vmul.f32 %v86, %v90
      %92 = vst.msk [vmem:[#allocation7] sm:$0x3] %vm71, %v91
    $region25: #{tpu_custom_call.1} parent=1 // pred_fallthru
      _
    // Predicated region
    $region26: #{tpu_custom_call.1} parent=1 // pred_check
      _
    $region27: #{tpu_custom_call.1} parent=1 // pred_check_branch
      %94 = sbr.rel (0) target = $region29
    $region28: #{tpu_custom_call.1} parent=1 // pred_region
      %s96 = ssub.s32 32, 32
      %97 = vsyncadd [#allocation6], %s96
      %s99 = sshll.u32 [#allocation7], 4
      %s100 = int_to_ptr.vmem [resolvable:$true] %s99
      %102 = dma.vmem_to_hbm [thread:$0]  %s100, 32, %s3, [#allocation6]
    $region29: #{tpu_custom_call.1} parent=1 // pred_fallthru
      _
    // Predicated region
    $region30: #{tpu_custom_call.1} parent=1 // pred_check
      _
    $region31: #{tpu_custom_call.1} parent=1 // pred_check_branch
      %104 = sbr.rel (0) target = $region33
    $region32: #{tpu_custom_call.1} parent=1 // pred_region
      %105 = dma.done [#allocation6], 32
    $region33: #{tpu_custom_call.1} parent=1 // pred_fallthru
      _
    %106 = vsyncpa [#allocation5], 1
    %107 = vsyncpa [#allocation6], 1

</llo_original>
